<compile_context>
chip_gen: v7x
topology: tpu7x:2x2x1
jax: 0.10.0
libtpu: 0.0.40
codegen_flags: <defaults>
</compile_context>

<pallas_src>
import functools

import jax
import jax.numpy as jnp
from jax.experimental import pallas as pl
from jax.experimental.pallas import tpu as pltpu


def _silu(y, approx):
    if approx:
        # exp and the reciprocal both land on the EUP slot (free vs. VALU div).
        return y * pl.reciprocal(1.0 + jnp.exp(-y), approx=True)
    return y * jax.nn.sigmoid(y)


def residual_kernel(x_ref, w1_ref, b1_ref, w2_ref, b2_ref, out_ref,
                    xpad_ref, ypad_ref, *, approx_silu=True):
    # x_ref   : (1, H, W*C)          lane-dense input rows, f32
    # w1_ref  : (3, (W+2)*C,  W*Cm)  banded conv1 weights (one slab per dy), BN1 folded
    # b1_ref  : (1, W*Cm)            folded BN1 bias, tiled across W, f32
    # w2_ref  : (3, (W+2)*Cm, W*C)   banded conv2 weights, BN2 folded
    # b2_ref  : (1, W*C)             folded BN2 bias, tiled across W, f32
    # out_ref : (1, H, W*C)
    # xpad_ref: VMEM (H+2, (W+2)*C)  zero-padded conv1 input (compute dtype)
    # ypad_ref: VMEM (H+2, (W+2)*Cm) zero-padded conv2 input (compute dtype)
    H = x_ref.shape[1]
    WC = x_ref.shape[2]
    PWC = xpad_ref.shape[1]
    WCm = w1_ref.shape[2]
    PWCm = ypad_ref.shape[1]
    C = (PWC - WC) // 2
    Cm = (PWCm - WCm) // 2
    cdt = xpad_ref.dtype

    x = x_ref[0]                                            # (H, W*C) f32

    # ---- zero-padded conv1 input: one full-width store, lane-packed ----
    zrow = jnp.zeros((1, PWC), cdt)
    zc = jnp.zeros((H, C), cdt)
    xpad_ref[...] = jnp.concatenate(
        [zrow,
         jnp.concatenate([zc, x.astype(cdt), zc], axis=1),   # pre-padded rows
         zrow], axis=0)

    # ---- conv1 + BN1 + SiLU: 3 lane-dense matmuls (one per kernel row dy) ----
    y1 = jnp.zeros((H, WCm), jnp.float32)
    for dy in range(3):                                     # unrolled, static
        y1 += jnp.dot(xpad_ref[dy:dy + H, :], w1_ref[dy],
                      preferred_element_type=jnp.float32)
    y1 = _silu(y1 + b1_ref[0], approx_silu)                 # f32 epilogue

    # ---- zero-padded conv2 input ----
    zrow_m = jnp.zeros((1, PWCm), cdt)
    zcm = jnp.zeros((H, Cm), cdt)
    ypad_ref[...] = jnp.concatenate(
        [zrow_m,
         jnp.concatenate([zcm, y1.astype(cdt), zcm], axis=1),
         zrow_m], axis=0)

    # ---- conv2 + BN2 + SiLU ----
    y2 = jnp.zeros((H, WC), jnp.float32)
    for dy in range(3):
        y2 += jnp.dot(ypad_ref[dy:dy + H, :], w2_ref[dy],
                      preferred_element_type=jnp.float32)
    y2 = _silu(y2 + b2_ref[0], approx_silu)

    # ---- residual add (f32), full-lane store ----
    out_ref[0] = (x + y2).astype(out_ref.dtype)


def _fold_bn(w, bn, eps):
    """Fold inference BatchNorm into the conv: BN(y) = y*s + b, s into weights."""
    g, beta, mean, var = bn
    s = g / jnp.sqrt(var + eps)
    return w * s[None, None, None, :], (beta - mean * s)


def _banded_weights(wf, W, dtype):
    """(3,3,Cin,Cout) HWIO -> (3, (W+2)*Cin, W*Cout) block-Toeplitz slabs.

    slab[dy][wp*Cin+ci, w*Cout+co] = wf[dy, wp-w, ci, co] if 0 <= wp-w <= 2 else 0,
    so that pad-1 conv over lane-packed rows is   sum_dy  xpad[dy:dy+H, :] @ slab[dy].
    """
    kh, kw, cin, cout = wf.shape
    sel = (jnp.arange(W + 2)[None, :, None]
           == jnp.arange(W)[None, None, :] + jnp.arange(kw)[:, None, None])
    m = jnp.einsum('dpw,ydio->ypiwo', sel.astype(wf.dtype), wf)
    return m.reshape(kh, (W + 2) * cin, W * cout).astype(dtype)


def residual_forward(x_nhwc, w1, bn1, w2, bn2, *, eps=1e-3,
                     compute_dtype=jnp.bfloat16, approx_silu=True):
    """x_nhwc: (B,H,W,C) f32.  w1: (3,3,C,Cmid) HWIO, w2: (3,3,Cmid,C) HWIO.
    bn1/bn2: (gamma, beta, running_mean, running_var) of each conv's output."""
    B, H, W, C = x_nhwc.shape
    Cm = w1.shape[-1]

    w1f, b1 = _fold_bn(w1, bn1, eps)
    w2f, b2 = _fold_bn(w2, bn2, eps)
    w1b = _banded_weights(w1f, W, compute_dtype)             # (3, (W+2)*C,  W*Cm)
    w2b = _banded_weights(w2f, W, compute_dtype)             # (3, (W+2)*Cm, W*C)
    b1t = jnp.tile(b1, W).reshape(1, W * Cm).astype(jnp.float32)
    b2t = jnp.tile(b2, W).reshape(1, W * C).astype(jnp.float32)

    # Lane-dense I/O: rows of W*C contiguous lanes (= 128 here -> full vregs).
    x2d = x_nhwc.reshape(B, H, W * C)

    kernel = functools.partial(residual_kernel, approx_silu=approx_silu)
    out = pl.pallas_call(
        kernel,
        out_shape=jax.ShapeDtypeStruct((B, H, W * C), x_nhwc.dtype),
        grid_spec=pltpu.PrefetchScalarGridSpec(
            num_scalar_prefetch=0,
            grid=(B,),
            in_specs=[
                pl.BlockSpec((1, H, W * C), lambda b: (b, 0, 0)),            # x
                pl.BlockSpec((3, (W + 2) * C, W * Cm), lambda b: (0, 0, 0)),  # w1
                pl.BlockSpec((1, W * Cm), lambda b: (0, 0)),                  # b1
                pl.BlockSpec((3, (W + 2) * Cm, W * C), lambda b: (0, 0, 0)),  # w2
                pl.BlockSpec((1, W * C), lambda b: (0, 0)),                   # b2
            ],
            out_specs=pl.BlockSpec((1, H, W * C), lambda b: (b, 0, 0)),
            scratch_shapes=[
                pltpu.VMEM((H + 2, (W + 2) * C), compute_dtype),
                pltpu.VMEM((H + 2, (W + 2) * Cm), compute_dtype),
            ],
        ),
        compiler_params=pltpu.CompilerParams(
            dimension_semantics=("parallel",)),
    )(x2d, w1b, b1t, w2b, b2t)
    return out.reshape(B, H, W, C)


# ---------------------------- pure-JAX reference ----------------------------
def _conv_bn_silu_ref(x, w, bn, eps=1e-3):
    g, beta, mean, var = bn
    y = jax.lax.conv_general_dilated(
        x, w, window_strides=(1, 1), padding=((1, 1), (1, 1)),
        dimension_numbers=("NHWC", "HWIO", "NHWC"))
    y = (y - mean) / jnp.sqrt(var + eps) * g + beta
    return y * jax.nn.sigmoid(y)


def residual_ref(x_nhwc, w1, bn1, w2, bn2):
    return x_nhwc + _conv_bn_silu_ref(_conv_bn_silu_ref(x_nhwc, w1, bn1),
                                      w2, bn2)


if __name__ == "__main__":
    B, C, H, W = 2, 8, 16, 16          # ch=8, e=0.5 -> Cmid=4; W*C = 128 lanes
    Cm = C // 2

    key = jax.random.PRNGKey(0)
    kx, kw1, kw2, kb1, kb2 = jax.random.split(key, 5)

    # PyTorch-style NCHW input, permuted to NHWC (channels-last) for the kernel.
    x_nchw = jax.random.normal(kx, (B, C, H, W), jnp.float32)
    x_nhwc = jnp.transpose(x_nchw, (0, 2, 3, 1))

    w1 = jax.random.normal(kw1, (3, 3, C, Cm), jnp.float32) * 0.1
    w2 = jax.random.normal(kw2, (3, 3, Cm, C), jnp.float32) * 0.1

    def make_bn(k, n):
        k1, k2, k3, k4 = jax.random.split(k, 4)
        return (jax.random.uniform(k1, (n,), minval=0.5, maxval=1.5),   # gamma
                jax.random.normal(k2, (n,)) * 0.1,                      # beta
                jax.random.normal(k3, (n,)) * 0.1,                      # running mean
                jax.random.uniform(k4, (n,), minval=0.5, maxval=1.5))   # running var

    bn1 = make_bn(kb1, Cm)
    bn2 = make_bn(kb2, C)

    ref = residual_ref(x_nhwc, w1, bn1, w2, bn2)

    # f32 matmul path + exact sigmoid: tight check of the banded-conv algorithm.
    out_f32 = jax.block_until_ready(
        residual_forward(x_nhwc, w1, bn1, w2, bn2,
                         compute_dtype=jnp.float32, approx_silu=False))
    assert out_f32.shape == (B, H, W, C)
    assert jnp.allclose(out_f32, ref, atol=1e-3, rtol=1e-3), \
        float(jnp.max(jnp.abs(out_f32 - ref)))

    # bf16 matmul feed + EUP SiLU (default fast path): looser tolerance since
    # both 3x3 convs round their inputs to bf16 (f32 accumulation kept).
    out_bf16 = jax.block_until_ready(
        residual_forward(x_nhwc, w1, bn1, w2, bn2))
    assert out_bf16.shape == (B, H, W, C)
    assert jnp.allclose(out_bf16, ref, atol=1e-1, rtol=1e-1), \
        float(jnp.max(jnp.abs(out_bf16 - ref)))

    print("KERNEL_OK")
</pallas_src>

<mosaic_0001>
module attributes {stable_mosaic.version = 11 : i64} {
  func.func @residual_kernel(%arg0: i32, %arg1: memref<1x16x128xf32, #tpu.memory_space<vmem>>, %arg2: memref<3x144x64xf32, #tpu.memory_space<vmem>>, %arg3: memref<1x64xf32, #tpu.memory_space<vmem>>, %arg4: memref<3x72x128xf32, #tpu.memory_space<vmem>>, %arg5: memref<1x128xf32, #tpu.memory_space<vmem>>, %arg6: memref<1x16x128xf32, #tpu.memory_space<vmem>>, %arg7: memref<18x144xf32, #tpu.memory_space<vmem>>, %arg8: memref<18x72xf32, #tpu.memory_space<vmem>>) attributes {dimension_semantics = [#tpu.dimension_semantics<parallel>], iteration_bounds = array<i64: 2>, scalar_prefetch = 0 : i64, scratch_operands = 2 : i64, tpu.core_type = #tpu.core_type<tc>, window_params = [{transform_indices = @transform_0, window_bounds = array<i64: 1, 16, 128>}, {pipeline_mode = #tpu.pipeline_mode<synchronous>, transform_indices = @transform_1, window_bounds = array<i64: 3, 144, 64>}, {pipeline_mode = #tpu.pipeline_mode<synchronous>, transform_indices = @transform_2, window_bounds = array<i64: 1, 64>}, {pipeline_mode = #tpu.pipeline_mode<synchronous>, transform_indices = @transform_3, window_bounds = array<i64: 3, 72, 128>}, {pipeline_mode = #tpu.pipeline_mode<synchronous>, transform_indices = @transform_4, window_bounds = array<i64: 1, 128>}, {transform_indices = @transform_5, window_bounds = array<i64: 1, 16, 128>}]} {
    %c0 = arith.constant 0 : index
    %c0_0 = arith.constant 0 : index
    %c0_1 = arith.constant 0 : index
    %0 = vector.load %arg1[%c0, %c0_0, %c0_1] : memref<1x16x128xf32, #tpu.memory_space<vmem>>, vector<1x16x128xf32>
    %1 = vector.shape_cast %0 : vector<1x16x128xf32> to vector<16x128xf32>
    %cst = arith.constant 0.000000e+00 : f32
    %2 = vector.broadcast %cst : f32 to vector<1x144xf32>
    %cst_2 = arith.constant 0.000000e+00 : f32
    %3 = vector.broadcast %cst_2 : f32 to vector<16x8xf32>
    %4 = tpu.concatenate %3, %1, %3 in 1 : vector<16x8xf32>, vector<16x128xf32>, vector<16x8xf32> -> vector<16x144xf32>
    %5 = tpu.concatenate %2, %4, %2 in 0 : vector<1x144xf32>, vector<16x144xf32>, vector<1x144xf32> -> vector<18x144xf32>
    %c0_3 = arith.constant 0 : index
    %c0_4 = arith.constant 0 : index
    %6 = vector.load %arg7[%c0_3, %c0_4] : memref<18x144xf32, #tpu.memory_space<vmem>>, vector<18x144xf32>
    tpu.vector_store %arg7[%c0_3, %c0_4], %5 {strides = array<i32>} : memref<18x144xf32, #tpu.memory_space<vmem>>, vector<18x144xf32>,
    %cst_5 = arith.constant 0.000000e+00 : f32
    %7 = vector.broadcast %cst_5 : f32 to vector<16x64xf32>
    %c0_6 = arith.constant 0 : index
    %c0_7 = arith.constant 0 : index
    %8 = vector.load %arg7[%c0_6, %c0_7] : memref<18x144xf32, #tpu.memory_space<vmem>>, vector<16x144xf32>
    %c0_8 = arith.constant 0 : index
    %c0_9 = arith.constant 0 : index
    %c0_10 = arith.constant 0 : index
    %9 = vector.load %arg2[%c0_8, %c0_9, %c0_10] : memref<3x144x64xf32, #tpu.memory_space<vmem>>, vector<1x144x64xf32>
    %10 = vector.shape_cast %9 : vector<1x144x64xf32> to vector<144x64xf32>
    %cst_11 = arith.constant dense<0.000000e+00> : vector<16x64xf32>
    %11 = tpu.matmul %8, %10, %cst_11 {dimension_numbers = #tpu.dot_dimension_numbers<[1], [0], [0], [1], [0, 0, 1, 1], [], []>} : vector<16x144xf32>, vector<144x64xf32>, vector<16x64xf32> -> vector<16x64xf32>
    %12 = arith.addf %7, %11 : vector<16x64xf32>
    %c1 = arith.constant 1 : index
    %c0_12 = arith.constant 0 : index
    %13 = vector.load %arg7[%c1, %c0_12] : memref<18x144xf32, #tpu.memory_space<vmem>>, vector<16x144xf32>
    %c1_13 = arith.constant 1 : index
    %c0_14 = arith.constant 0 : index
    %c0_15 = arith.constant 0 : index
    %14 = vector.load %arg2[%c1_13, %c0_14, %c0_15] : memref<3x144x64xf32, #tpu.memory_space<vmem>>, vector<1x144x64xf32>
    %15 = vector.shape_cast %14 : vector<1x144x64xf32> to vector<144x64xf32>
    %cst_16 = arith.constant dense<0.000000e+00> : vector<16x64xf32>
    %16 = tpu.matmul %13, %15, %cst_16 {dimension_numbers = #tpu.dot_dimension_numbers<[1], [0], [0], [1], [0, 0, 1, 1], [], []>} : vector<16x144xf32>, vector<144x64xf32>, vector<16x64xf32> -> vector<16x64xf32>
    %17 = arith.addf %12, %16 : vector<16x64xf32>
    %c2 = arith.constant 2 : index
    %c0_17 = arith.constant 0 : index
    %18 = vector.load %arg7[%c2, %c0_17] : memref<18x144xf32, #tpu.memory_space<vmem>>, vector<16x144xf32>
    %c2_18 = arith.constant 2 : index
    %c0_19 = arith.constant 0 : index
    %c0_20 = arith.constant 0 : index
    %19 = vector.load %arg2[%c2_18, %c0_19, %c0_20] : memref<3x144x64xf32, #tpu.memory_space<vmem>>, vector<1x144x64xf32>
    %20 = vector.shape_cast %19 : vector<1x144x64xf32> to vector<144x64xf32>
    %cst_21 = arith.constant dense<0.000000e+00> : vector<16x64xf32>
    %21 = tpu.matmul %18, %20, %cst_21 {dimension_numbers = #tpu.dot_dimension_numbers<[1], [0], [0], [1], [0, 0, 1, 1], [], []>} : vector<16x144xf32>, vector<144x64xf32>, vector<16x64xf32> -> vector<16x64xf32>
    %22 = arith.addf %17, %21 : vector<16x64xf32>
    %c0_22 = arith.constant 0 : index
    %c0_23 = arith.constant 0 : index
    %23 = vector.load %arg3[%c0_22, %c0_23] : memref<1x64xf32, #tpu.memory_space<vmem>>, vector<1x64xf32>
    %24 = vector.shape_cast %23 : vector<1x64xf32> to vector<64xf32>
    %25 = vector.shape_cast %24 : vector<64xf32> to vector<1x64xf32>
    %26 = vector.broadcast %25 : vector<1x64xf32> to vector<16x64xf32>
    %27 = arith.addf %22, %26 : vector<16x64xf32>
    %28 = arith.negf %27 : vector<16x64xf32>
    %29 = math.exp %28 : vector<16x64xf32>
    %cst_24 = arith.constant 1.000000e+00 : f32
    %30 = vector.broadcast %cst_24 : f32 to vector<16x64xf32>
    %31 = arith.addf %30, %29 : vector<16x64xf32>
    %32 = arith.divf %30, %31 : vector<16x64xf32>
    %33 = arith.mulf %27, %32 : vector<16x64xf32>
    %cst_25 = arith.constant 0.000000e+00 : f32
    %34 = vector.broadcast %cst_25 : f32 to vector<1x72xf32>
    %cst_26 = arith.constant 0.000000e+00 : f32
    %35 = vector.broadcast %cst_26 : f32 to vector<16x4xf32>
    %36 = tpu.concatenate %35, %33, %35 in 1 : vector<16x4xf32>, vector<16x64xf32>, vector<16x4xf32> -> vector<16x72xf32>
    %37 = tpu.concatenate %34, %36, %34 in 0 : vector<1x72xf32>, vector<16x72xf32>, vector<1x72xf32> -> vector<18x72xf32>
    %c0_27 = arith.constant 0 : index
    %c0_28 = arith.constant 0 : index
    %38 = vector.load %arg8[%c0_27, %c0_28] : memref<18x72xf32, #tpu.memory_space<vmem>>, vector<18x72xf32>
    tpu.vector_store %arg8[%c0_27, %c0_28], %37 {strides = array<i32>} : memref<18x72xf32, #tpu.memory_space<vmem>>, vector<18x72xf32>,
    %cst_29 = arith.constant 0.000000e+00 : f32
    %39 = vector.broadcast %cst_29 : f32 to vector<16x128xf32>
    %c0_30 = arith.constant 0 : index
    %c0_31 = arith.constant 0 : index
    %40 = vector.load %arg8[%c0_30, %c0_31] : memref<18x72xf32, #tpu.memory_space<vmem>>, vector<16x72xf32>
    %c0_32 = arith.constant 0 : index
    %c0_33 = arith.constant 0 : index
    %c0_34 = arith.constant 0 : index
    %41 = vector.load %arg4[%c0_32, %c0_33, %c0_34] : memref<3x72x128xf32, #tpu.memory_space<vmem>>, vector<1x72x128xf32>
    %42 = vector.shape_cast %41 : vector<1x72x128xf32> to vector<72x128xf32>
    %cst_35 = arith.constant dense<0.000000e+00> : vector<16x128xf32>
    %43 = tpu.matmul %40, %42, %cst_35 {dimension_numbers = #tpu.dot_dimension_numbers<[1], [0], [0], [1], [0, 0, 1, 1], [], []>} : vector<16x72xf32>, vector<72x128xf32>, vector<16x128xf32> -> vector<16x128xf32>
    %44 = arith.addf %39, %43 : vector<16x128xf32>
    %c1_36 = arith.constant 1 : index
    %c0_37 = arith.constant 0 : index
    %45 = vector.load %arg8[%c1_36, %c0_37] : memref<18x72xf32, #tpu.memory_space<vmem>>, vector<16x72xf32>
    %c1_38 = arith.constant 1 : index
    %c0_39 = arith.constant 0 : index
    %c0_40 = arith.constant 0 : index
    %46 = vector.load %arg4[%c1_38, %c0_39, %c0_40] : memref<3x72x128xf32, #tpu.memory_space<vmem>>, vector<1x72x128xf32>
    %47 = vector.shape_cast %46 : vector<1x72x128xf32> to vector<72x128xf32>
    %cst_41 = arith.constant dense<0.000000e+00> : vector<16x128xf32>
    %48 = tpu.matmul %45, %47, %cst_41 {dimension_numbers = #tpu.dot_dimension_numbers<[1], [0], [0], [1], [0, 0, 1, 1], [], []>} : vector<16x72xf32>, vector<72x128xf32>, vector<16x128xf32> -> vector<16x128xf32>
    %49 = arith.addf %44, %48 : vector<16x128xf32>
    %c2_42 = arith.constant 2 : index
    %c0_43 = arith.constant 0 : index
    %50 = vector.load %arg8[%c2_42, %c0_43] : memref<18x72xf32, #tpu.memory_space<vmem>>, vector<16x72xf32>
    %c2_44 = arith.constant 2 : index
    %c0_45 = arith.constant 0 : index
    %c0_46 = arith.constant 0 : index
    %51 = vector.load %arg4[%c2_44, %c0_45, %c0_46] : memref<3x72x128xf32, #tpu.memory_space<vmem>>, vector<1x72x128xf32>
    %52 = vector.shape_cast %51 : vector<1x72x128xf32> to vector<72x128xf32>
    %cst_47 = arith.constant dense<0.000000e+00> : vector<16x128xf32>
    %53 = tpu.matmul %50, %52, %cst_47 {dimension_numbers = #tpu.dot_dimension_numbers<[1], [0], [0], [1], [0, 0, 1, 1], [], []>} : vector<16x72xf32>, vector<72x128xf32>, vector<16x128xf32> -> vector<16x128xf32>
    %54 = arith.addf %49, %53 : vector<16x128xf32>
    %c0_48 = arith.constant 0 : index
    %c0_49 = arith.constant 0 : index
    %55 = vector.load %arg5[%c0_48, %c0_49] : memref<1x128xf32, #tpu.memory_space<vmem>>, vector<1x128xf32>
    %56 = vector.shape_cast %55 : vector<1x128xf32> to vector<128xf32>
    %57 = vector.shape_cast %56 : vector<128xf32> to vector<1x128xf32>
    %58 = vector.broadcast %57 : vector<1x128xf32> to vector<16x128xf32>
    %59 = arith.addf %54, %58 : vector<16x128xf32>
    %60 = arith.negf %59 : vector<16x128xf32>
    %61 = math.exp %60 : vector<16x128xf32>
    %cst_50 = arith.constant 1.000000e+00 : f32
    %62 = vector.broadcast %cst_50 : f32 to vector<16x128xf32>
    %63 = arith.addf %62, %61 : vector<16x128xf32>
    %64 = arith.divf %62, %63 : vector<16x128xf32>
    %65 = arith.mulf %59, %64 : vector<16x128xf32>
    %66 = arith.addf %1, %65 : vector<16x128xf32>
    %c0_51 = arith.constant 0 : index
    %c0_52 = arith.constant 0 : index
    %c0_53 = arith.constant 0 : index
    %67 = vector.load %arg6[%c0_51, %c0_52, %c0_53] : memref<1x16x128xf32, #tpu.memory_space<vmem>>, vector<1x16x128xf32>
    %68 = vector.shape_cast %67 : vector<1x16x128xf32> to vector<16x128xf32>
    %69 = vector.shape_cast %66 : vector<16x128xf32> to vector<1x16x128xf32>
    tpu.vector_store %arg6[%c0_51, %c0_52, %c0_53], %69 {strides = array<i32>} : memref<1x16x128xf32, #tpu.memory_space<vmem>>, vector<1x16x128xf32>,
    return
  }
  func.func @transform_0(%arg0: i32) -> (i32, i32, i32) {
    %c0_i32 = arith.constant 0 : i32
    %c0_i32_0 = arith.constant 0 : i32
    %c0_i32_1 = arith.constant 0 : i32
    return %arg0, %c0_i32, %c0_i32_0 : i32, i32, i32
  }
  func.func @transform_1(%arg0: i32) -> (i32, i32, i32) {
    %c0_i32 = arith.constant 0 : i32
    %c0_i32_0 = arith.constant 0 : i32
    %c0_i32_1 = arith.constant 0 : i32
    %c0_i32_2 = arith.constant 0 : i32
    return %c0_i32, %c0_i32_0, %c0_i32_1 : i32, i32, i32
  }
  func.func @transform_2(%arg0: i32) -> (i32, i32) {
    %c0_i32 = arith.constant 0 : i32
    %c0_i32_0 = arith.constant 0 : i32
    %c0_i32_1 = arith.constant 0 : i32
    return %c0_i32, %c0_i32_0 : i32, i32
  }
  func.func @transform_3(%arg0: i32) -> (i32, i32, i32) {
    %c0_i32 = arith.constant 0 : i32
    %c0_i32_0 = arith.constant 0 : i32
    %c0_i32_1 = arith.constant 0 : i32
    %c0_i32_2 = arith.constant 0 : i32
    return %c0_i32, %c0_i32_0, %c0_i32_1 : i32, i32, i32
  }
  func.func @transform_4(%arg0: i32) -> (i32, i32) {
    %c0_i32 = arith.constant 0 : i32
    %c0_i32_0 = arith.constant 0 : i32
    %c0_i32_1 = arith.constant 0 : i32
    return %c0_i32, %c0_i32_0 : i32, i32
  }
  func.func @transform_5(%arg0: i32) -> (i32, i32, i32) {
    %c0_i32 = arith.constant 0 : i32
    %c0_i32_0 = arith.constant 0 : i32
    %c0_i32_1 = arith.constant 0 : i32
    return %arg0, %c0_i32, %c0_i32_0 : i32, i32, i32
  }
}

</mosaic_0001>

<llo_original>
// kernel: tpu_custom_call.1
$region0: #{tpu_custom_call.1}
  #allocation0 [shape = 'u32[]', space=smem, size = 0x4, offset = 0x4, fixed_abs, tag = 'smem constant byte address 0x4 - core index']
  #allocation1 [shape = 'u32[144,128]{1,0:T(1,128)}', space=vmem, size = 0x12000, scoped, tag = 'internal scratch']
  #allocation2 [shape = 'f32[18,144]{1,0:T(8,128)}', space=vmem, size = 0x6000, scoped, tag = 'scratch operand']
  #allocation3 [shape = 'f32[18,72]{1,0:T(8,128)}', space=vmem, size = 0x3000, scoped, tag = 'scratch operand']
  %s0 = inlined_call_operand.vmem [shape: f32[2,16,128], index: 0, kind: input, shape index: {}]
  %s1 = inlined_call_operand.vmem [shape: f32[3,144,64], index: 1, kind: input, shape index: {}]
  %s2 = inlined_call_operand.vmem [shape: f32[1,64], index: 2, kind: input, shape index: {}]
  %s3 = inlined_call_operand.vmem [shape: f32[3,72,128], index: 3, kind: input, shape index: {}]
  %s4 = inlined_call_operand.vmem [shape: f32[1,128], index: 4, kind: input, shape index: {}]
  %s5 = inlined_call_operand.hbm [shape: f32[2,16,128], index: 5, kind: output, shape index: {}]
  %s6 = sld [smem:[#allocation0]]
  $region53: #{tpu_custom_call.1} parent=0
    _
  %s8 = ssub.s32 1, %s6
  %s9 = scalar_select 0, %s8, %s6
  $region1: #{tpu_custom_call.1} parent=0
    #allocation4 [shape = 'u8[16384]{0}', space=vmem, size = 0x4000, scoped, tag = 'output window, operand 0']
    #allocation5 [shape = 's32[2]{0}', space=sflag, size = 0x8, scoped, tag = 'scoped memory for tpu_custom_call.1']
    %10 = vsyncpa [#allocation5], 0
    %s11 = scalar_lea.sflag [#allocation5], 1
    %12 = vsyncpa %s11, 0
    loop: start=0, step=1, limit=4
    $region2: #{tpu_custom_call.1} parent=1 // loop_pre_header
      _
    $region3: #{tpu_custom_call.1} parent=1 // loop_header
      %s14 = sphi 0, %s18
      %p15 = scmp.ge.s32.totalorder %s14, 4
      %s24 = sphi 0, %s26
      %s27 = sphi 0, %s24
      %s28 = sphi 0, %s27
      %s44 = sphi 0, %s28
      %s48 = sphi 0, %s48
      %s50 = sphi 0, %s48
      %s51 = sphi 0, %s50
      %s65 = sphi 0, %s51
      %s69 = sphi 0, %s69
      %s71 = sphi 0, %s69
      %s72 = sphi 0, %s71
      %s86 = sphi 0, %s72
      %s90 = sphi 0, %s90
      %s92 = sphi 0, %s90
      %s93 = sphi 0, %s92
      %s107 = sphi 0, %s93
      %s111 = sphi 0, %s111
      %s113 = sphi 0, %s111
      %s114 = sphi 0, %s113
      %s128 = sphi 0, %s114
      %s134 = sphi 0, %s136
      %s137 = sphi 0, %s134
      %s138 = sphi 0, %s137
      %s154 = sphi 0, %s138
    $region4: #{tpu_custom_call.1} parent=1 // loop_header_branch
      %17 = sbr.rel (%p15) target = $region8
    $region5: #{tpu_custom_call.1} parent=1 // loop_body
      %s19 = ssub.s32 %s14, 1
      %s20 = ssub.s32 %s14, 2
      %s21 = sadd.s32 %s14, 1
      %s22 = ssub.s32 %s14, %s21
      %p23 = scmp.eq.s32.totalorder %s22, 0
      %s25 = sadd.s32 %s24, 1
      %s26 = scalar_select %p23, %s24, %s25
      %p29 = pneg %p23
      %p30 = scmp.eq.s32.totalorder %s14, 1
      %p31 = por %p29, %p30
      %p32 = scmp.ne.s32.totalorder %s24, %s27
      %p33 = scmp.eq.s32.totalorder %s14, 0
      %p34 = por %p32, %p33
      %p35 = scmp.ne.s32.totalorder %s24, %s27
      %p36 = scmp.eq.s32.totalorder %s19, 1
      %p37 = por %p35, %p36
      %p38 = scmp.ne.s32.totalorder %s27, %s28
      %p39 = scmp.eq.s32.totalorder %s19, 0
      %p40 = por %p38, %p39
      %p41 = scmp.ne.s32.totalorder %s27, %s28
      %p42 = scmp.eq.s32.totalorder %s20, 1
      %p43 = por %p41, %p42
      %p45 = scmp.ne.s32.totalorder %s28, %s44
      %p46 = scmp.eq.s32.totalorder %s20, 0
      %p47 = por %p45, %p46
      %s49 = sadd.s32 %s48, 1
      %p52 = scmp.eq.s32.totalorder %s14, 1
      %p53 = scmp.ne.s32.totalorder %s48, %s50
      %p54 = scmp.eq.s32.totalorder %s14, 0
      %p55 = por %p53, %p54
      %p56 = scmp.ne.s32.totalorder %s48, %s50
      %p57 = scmp.eq.s32.totalorder %s19, 1
      %p58 = por %p56, %p57
      %p59 = scmp.ne.s32.totalorder %s50, %s51
      %p60 = scmp.eq.s32.totalorder %s19, 0
      %p61 = por %p59, %p60
      %p62 = scmp.ne.s32.totalorder %s50, %s51
      %p63 = scmp.eq.s32.totalorder %s20, 1
      %p64 = por %p62, %p63
      %p66 = scmp.ne.s32.totalorder %s51, %s65
      %p67 = scmp.eq.s32.totalorder %s20, 0
      %p68 = por %p66, %p67
      %s70 = sadd.s32 %s69, 1
      %p73 = scmp.eq.s32.totalorder %s14, 1
      %p74 = scmp.ne.s32.totalorder %s69, %s71
      %p75 = scmp.eq.s32.totalorder %s14, 0
      %p76 = por %p74, %p75
      %p77 = scmp.ne.s32.totalorder %s69, %s71
      %p78 = scmp.eq.s32.totalorder %s19, 1
      %p79 = por %p77, %p78
      %p80 = scmp.ne.s32.totalorder %s71, %s72
      %p81 = scmp.eq.s32.totalorder %s19, 0
      %p82 = por %p80, %p81
      %p83 = scmp.ne.s32.totalorder %s71, %s72
      %p84 = scmp.eq.s32.totalorder %s20, 1
      %p85 = por %p83, %p84
      %p87 = scmp.ne.s32.totalorder %s72, %s86
      %p88 = scmp.eq.s32.totalorder %s20, 0
      %p89 = por %p87, %p88
      %s91 = sadd.s32 %s90, 1
      %p94 = scmp.eq.s32.totalorder %s14, 1
      %p95 = scmp.ne.s32.totalorder %s90, %s92
      %p96 = scmp.eq.s32.totalorder %s14, 0
      %p97 = por %p95, %p96
      %p98 = scmp.ne.s32.totalorder %s90, %s92
      %p99 = scmp.eq.s32.totalorder %s19, 1
      %p100 = por %p98, %p99
      %p101 = scmp.ne.s32.totalorder %s92, %s93
      %p102 = scmp.eq.s32.totalorder %s19, 0
      %p103 = por %p101, %p102
      %p104 = scmp.ne.s32.totalorder %s92, %s93
      %p105 = scmp.eq.s32.totalorder %s20, 1
      %p106 = por %p104, %p105
      %p108 = scmp.ne.s32.totalorder %s93, %s107
      %p109 = scmp.eq.s32.totalorder %s20, 0
      %p110 = por %p108, %p109
      %s112 = sadd.s32 %s111, 1
      %p115 = scmp.eq.s32.totalorder %s14, 1
      %p116 = scmp.ne.s32.totalorder %s111, %s113
      %p117 = scmp.eq.s32.totalorder %s14, 0
      %p118 = por %p116, %p117
      %p119 = scmp.ne.s32.totalorder %s111, %s113
      %p120 = scmp.eq.s32.totalorder %s19, 1
      %p121 = por %p119, %p120
      %p122 = scmp.ne.s32.totalorder %s113, %s114
      %p123 = scmp.eq.s32.totalorder %s19, 0
      %p124 = por %p122, %p123
      %p125 = scmp.ne.s32.totalorder %s113, %s114
      %p126 = scmp.eq.s32.totalorder %s20, 1
      %p127 = por %p125, %p126
      %p129 = scmp.ne.s32.totalorder %s114, %s128
      %p130 = scmp.eq.s32.totalorder %s20, 0
      %p131 = por %p129, %p130
      %s132 = ssub.s32 %s14, %s21
      %p133 = scmp.eq.s32.totalorder %s132, 0
      %s135 = sadd.s32 %s134, 1
      %s136 = scalar_select %p133, %s134, %s135
      %p139 = pneg %p133
      %p140 = scmp.eq.s32.totalorder %s14, 1
      %p141 = por %p139, %p140
      %p142 = scmp.ne.s32.totalorder %s134, %s137
      %p143 = scmp.eq.s32.totalorder %s14, 0
      %p144 = por %p142, %p143
      %p145 = scmp.ne.s32.totalorder %s134, %s137
      %p146 = scmp.eq.s32.totalorder %s19, 1
      %p147 = por %p145, %p146
      %p148 = scmp.ne.s32.totalorder %s137, %s138
      %p149 = scmp.eq.s32.totalorder %s19, 0
      %p150 = por %p148, %p149
      %p151 = scmp.ne.s32.totalorder %s137, %s138
      %p152 = scmp.eq.s32.totalorder %s20, 1
      %p153 = por %p151, %p152
      %p155 = scmp.ne.s32.totalorder %s138, %s154
      %p156 = scmp.eq.s32.totalorder %s20, 0
      %p157 = por %p155, %p156
      %p158 = scmp.le.s32.totalorder 1, %s14
      %p159 = scmp.lt.s32.totalorder %s14, 3
      %p160 = pnand %p158, %p159
      %p161 = pneg %p160
      // Predicated region
      $region9: #{tpu_custom_call.1} parent=5 // pred_check
        _
      $region10: #{tpu_custom_call.1} parent=5 // pred_check_branch
        %163 = sbr.rel (%p160) target = $region12
      $region11: #{tpu_custom_call.1} parent=5 // pred_region
        %s164 = ssub.s32 %s14, 1
        // Predicated region
        $region13: #{tpu_custom_call.1} parent=11 // pred_check
          %p165 = pneg %p61
        $region14: #{tpu_custom_call.1} parent=11 // pred_check_branch
          %167 = sbr.rel (%p165) target = $region16
        $region15: #{tpu_custom_call.1} parent=11 // pred_region
          _
        $region16: #{tpu_custom_call.1} parent=11 // pred_fallthru
          _
        // Predicated region
        $region17: #{tpu_custom_call.1} parent=11 // pred_check
          %p168 = pneg %p82
        $region18: #{tpu_custom_call.1} parent=11 // pred_check_branch
          %170 = sbr.rel (%p168) target = $region20
        $region19: #{tpu_custom_call.1} parent=11 // pred_region
          _
        $region20: #{tpu_custom_call.1} parent=11 // pred_fallthru
          _
        // Predicated region
        $region21: #{tpu_custom_call.1} parent=11 // pred_check
          %p171 = pneg %p103
        $region22: #{tpu_custom_call.1} parent=11 // pred_check_branch
          %173 = sbr.rel (%p171) target = $region24
        $region23: #{tpu_custom_call.1} parent=11 // pred_region
          _
        $region24: #{tpu_custom_call.1} parent=11 // pred_fallthru
          _
        // Predicated region
        $region25: #{tpu_custom_call.1} parent=11 // pred_check
          %p174 = pneg %p124
        $region26: #{tpu_custom_call.1} parent=11 // pred_check_branch
          %176 = sbr.rel (%p174) target = $region28
        $region27: #{tpu_custom_call.1} parent=11 // pred_region
          _
        $region28: #{tpu_custom_call.1} parent=11 // pred_fallthru
          _
      $region12: #{tpu_custom_call.1} parent=5 // pred_fallthru
        _
      %p177 = scmp.lt.s32.totalorder %s14, 2
      // Predicated region
      $region29: #{tpu_custom_call.1} parent=5 // pred_check
        %p178 = pneg %p177
      $region30: #{tpu_custom_call.1} parent=5 // pred_check_branch
        %180 = sbr.rel (%p178) target = $region32
      $region31: #{tpu_custom_call.1} parent=5 // pred_region
        // Predicated region
        $region33: #{tpu_custom_call.1} parent=31 // pred_check
          %p181 = pneg %p34
        $region34: #{tpu_custom_call.1} parent=31 // pred_check_branch
          %183 = sbr.rel (%p181) target = $region36
        $region35: #{tpu_custom_call.1} parent=31 // pred_region
          %p184 = scmp.lt.s32.totalorder %s14, 1
          %s185 = scalar_select %p184, %s14, 1
          %s186 = smul.addr %s185, 2
          %s187 = smul.addr %s186, 8
          %s188 = scalar_lea.vmem %s0, %s187
        $region36: #{tpu_custom_call.1} parent=31 // pred_fallthru
          _
      $region32: #{tpu_custom_call.1} parent=5 // pred_fallthru
        _
      %p189 = scmp.le.s32.totalorder 1, %s14
      %p190 = scmp.lt.s32.totalorder %s14, 3
      %p191 = pnand %p189, %p190
      %p192 = pneg %p191
      // Predicated region
      $region37: #{tpu_custom_call.1} parent=5 // pred_check
        _
      $region38: #{tpu_custom_call.1} parent=5 // pred_check_branch
        %194 = sbr.rel (%p191) target = $region40
      $region39: #{tpu_custom_call.1} parent=5 // pred_region
        %s195 = ssub.s32 %s14, 1
        %p196 = scmp.lt.s32.totalorder %s19, 1
        %s197 = scalar_select %p196, %s19, 1
        %s198 = smul.addr %s197, 2
        %s199 = smul.addr %s198, 8
        %s200 = scalar_lea.vmem %s0, %s199
        %p201 = pneg %p40
        %p202 = pneg %p37
        %p203 = pneg %p61
        %p204 = pneg %p58
        %p205 = pneg %p82
        %p206 = pneg %p79
        %p207 = pneg %p103
        %p208 = pneg %p100
        %p209 = pneg %p124
        %p210 = pneg %p121
        %p211 = pneg %p150
        %p212 = pneg %p147
        %s213 = sand.u32 %s137, 1
        %s214 = scalar_lea.sflag [#allocation5], %s213
        %s215 = sand.u32 %s137, 1
        %s216 = smul.addr %s215, 16
        %s217 = scalar_lea.vmem [#allocation4], %s216
        %p218 = scmp.lt.s32.totalorder %s19, 1
        %s219 = scalar_select %p218, %s19, 1
        %s220 = smul.addr %s219, 2
        %s221 = smul.addr %s220, 8
        %s222 = scalar_lea.vmem %s0, %s221
        %v223 = vld [vmem:[%s222] sm:$0xff]
        %v224 = vld [vmem:[%s222 + $0x8] sm:$0xff]
        %227 = vrot.lane.b32.xlu0 %v223, 8
        %v228 = vpop.permute.xlu0 %227
        %229 = vrot.lane.b32.xlu0 %v224, 8
        %v230 = vpop.permute.xlu0 %229
        %vm233 = vcmask 64512
        %v234 = vsel %vm233, 0.0, %v228
        %v235 = vsel %vm233, 0.0, %v230
        %v236 = vsel %vm233, %v228, 0.0
        %v237 = vsel %vm233, %v230, 0.0
        %vm242 = vcmask 1040384
        %v243 = vrot.slane %v234, 7
        %v244 = vrot.slane %v236, 7
        %v245 = vrot.slane %v235, 7
        %v246 = vsel %vm242, %v243, %v245
        %v247 = vrot.slane %v237, 7
        %v248 = vsel %vm242, %v244, %v247
        %v255 = vsel %vm242, 0.0, %v243
        %v256 = vsel %vm242, 0.0, %v244
        %v257 = vsel %vm242, %v245, 0.0
        %v258 = vsel %vm242, %v247, 0.0
        %259 = vst [vmem:[#allocation2] sm:$0xff] %v255
        %vm260 = vcmask 130048
        %261 = vst.msk [vmem:[#allocation2 + $0x8] sm:$0xff] %vm260, %v256
        %262 = vst [vmem:[#allocation2 + $0x10] sm:$0xff] %v246
        %263 = vst.msk [vmem:[#allocation2 + $0x18] sm:$0xff] %vm260, %v248
        %264 = vst [vmem:[#allocation2 + $0x20] sm:$0x3] %v257
        %vm265 = vcmask 123904
        %266 = vst.msk [vmem:[#allocation2 + $0x28] sm:$0x3] %vm265, %v258
        %v267 = vld [vmem:[#allocation2] sm:$0xff]
        %v268 = vld [vmem:[#allocation2 + $0x8] sm:$0xff]
        %v269 = vld [vmem:[#allocation2 + $0x10] sm:$0xff]
        %v270 = vld [vmem:[#allocation2 + $0x18] sm:$0xff]
        %v271 = vld [vmem:[%s1] sm:$0xff]
        %v272 = vld [vmem:[%s1 + $0x8] sm:$0xff]
        %v273 = vld [vmem:[%s1 + $0x10] sm:$0xff]
        %v274 = vld [vmem:[%s1 + $0x18] sm:$0xff]
        %v275 = vld [vmem:[%s1 + $0x20] sm:$0xff]
        %v276 = vld [vmem:[%s1 + $0x28] sm:$0xff]
        %v277 = vld [vmem:[%s1 + $0x30] sm:$0xff]
        %v278 = vld [vmem:[%s1 + $0x38] sm:$0xff]
        %v279 = vld [vmem:[%s1 + $0x40] sm:$0xff]
        %v280 = vld [vmem:[%s1 + $0x48] sm:$0xff]
        %v281 = vld [vmem:[%s1 + $0x50] sm:$0xff]
        %v282 = vld [vmem:[%s1 + $0x58] sm:$0xff]
        %v283 = vld [vmem:[%s1 + $0x60] sm:$0xff]
        %v284 = vld [vmem:[%s1 + $0x68] sm:$0xff]
        %v285 = vld [vmem:[%s1 + $0x70] sm:$0xff]
        %v286 = vld [vmem:[%s1 + $0x78] sm:$0xff]
        %v287 = vld [vmem:[%s1 + $0x80] sm:$0xff]
        %v288 = vld [vmem:[%s1 + $0x88] sm:$0xff]
        %v289 = vld [vmem:[#allocation2] sm:$0xfe]
        %v290 = vld [vmem:[#allocation2 + $0x8] sm:$0xfe]
        %v291 = vld [vmem:[#allocation2 + $0x20] sm:$0x1]
        %v292 = vld [vmem:[#allocation2 + $0x28] sm:$0x1]
        %s293 = scalar_lea.vmem %s1, 144
        %v294 = vld [vmem:[%s293] sm:$0xff]
        %v295 = vld [vmem:[%s293 + $0x8] sm:$0xff]
        %v296 = vld [vmem:[%s293 + $0x10] sm:$0xff]
        %v297 = vld [vmem:[%s293 + $0x18] sm:$0xff]
        %v298 = vld [vmem:[%s293 + $0x20] sm:$0xff]
        %v299 = vld [vmem:[%s293 + $0x28] sm:$0xff]
        %v300 = vld [vmem:[%s293 + $0x30] sm:$0xff]
        %v301 = vld [vmem:[%s293 + $0x38] sm:$0xff]
        %v302 = vld [vmem:[%s293 + $0x40] sm:$0xff]
        %v303 = vld [vmem:[%s293 + $0x48] sm:$0xff]
        %v304 = vld [vmem:[%s293 + $0x50] sm:$0xff]
        %v305 = vld [vmem:[%s293 + $0x58] sm:$0xff]
        %v306 = vld [vmem:[%s293 + $0x60] sm:$0xff]
        %v307 = vld [vmem:[%s293 + $0x68] sm:$0xff]
        %v308 = vld [vmem:[%s293 + $0x70] sm:$0xff]
        %v309 = vld [vmem:[%s293 + $0x78] sm:$0xff]
        %v310 = vld [vmem:[%s293 + $0x80] sm:$0xff]
        %v311 = vld [vmem:[%s293 + $0x88] sm:$0xff]
        %vm318 = vcmask 1046528
        %v319 = vrot.slane %v289, 1
        %v320 = vrot.slane %v269, 1
        %v321 = vsel %vm318, %v319, %v320
        %v322 = vrot.slane %v290, 1
        %v323 = vrot.slane %v270, 1
        %v324 = vsel %vm318, %v322, %v323
        %v325 = vrot.slane %v291, 1
        %v326 = vsel %vm318, %v320, %v325
        %v327 = vrot.slane %v292, 1
        %v328 = vsel %vm318, %v323, %v327
        %v331 = vsel %vm260, %v324, 0
        %v333 = vsel %vm260, %v328, 0
        %335 = vmatprep.subr.mxu0 0.0
        %336 = vmatpush1.msra.mxu0 %v294
        %337 = vmatprep.subr.mxu0 0.0
        %338 = vmatpush1.msra.mxu0 %v295
        %339 = vmatprep.subr.mxu0 0.0
        %340 = vmatpush1.msra.mxu0 %v296
        %341 = vmatprep.subr.mxu0 0.0
        %342 = vmatpush1.msra.mxu0 %v297
        %343 = vmatprep.subr.mxu0 0.0
        %344 = vmatpush1.msra.mxu0 %v298
        %345 = vmatprep.subr.mxu0 0.0
        %346 = vmatpush1.msra.mxu0 %v299
        %347 = vmatprep.subr.mxu0 0.0
        %348 = vmatpush1.msra.mxu0 %v300
        %349 = vmatprep.subr.mxu0 0.0
        %350 = vmatpush1.msra.mxu0 %v301
        %351 = vmatprep.subr.mxu0 0.0
        %352 = vmatpush1.msra.mxu0 %v302
        %353 = vmatprep.subr.mxu0 0.0
        %354 = vmatpush1.msra.mxu0 %v303
        %355 = vmatprep.subr.mxu0 0.0
        %356 = vmatpush1.msra.mxu0 %v304
        %357 = vmatprep.subr.mxu0 0.0
        %358 = vmatpush1.msra.mxu0 %v305
        %359 = vmatprep.subr.mxu0 0.0
        %360 = vmatpush1.msra.mxu0 %v306
        %361 = vmatprep.subr.mxu0 0.0
        %362 = vmatpush1.msra.mxu0 %v307
        %363 = vmatprep.subr.mxu0 0.0
        %364 = vmatpush1.msra.mxu0 %v308
        %365 = vmatprep.subr.mxu0 0.0
        %366 = vmatpush1.msra.mxu0 %v309
        %367 = vmatprep.subr.mxu0 0.0
        %368 = vmatpush1.msra.mxu0 %v310
        %369 = vmatprep.subr.mxu0 0.0
        %370 = vmatpush1.msra.mxu0 %v311
        %371 = vmatprep.subr.mxu0 0.0
        %372 = vmatpush1.msra.mxu0 0.0
        %373 = vmatprep.subr.mxu0 0.0
        %374 = vmatpush1.msra.mxu0 0.0
        %375 = vmatprep.subr.mxu0 0.0
        %376 = vmatpush1.msra.mxu0 0.0
        %377 = vmatprep.subr.mxu0 0.0
        %378 = vmatpush1.msra.mxu0 0.0
        %379 = vmatprep.subr.mxu0 0.0
        %380 = vmatpush1.msra.mxu0 0.0
        %381 = vmatprep.subr.mxu0 0.0
        %382 = vmatpush1.msra.mxu0 0.0
        %383 = vmatprep.subr.mxu0 0.0
        %384 = vmatpush1.msra.mxu0 0.0
        %385 = vmatprep.subr.mxu0 0.0
        %386 = vmatpush1.msra.mxu0 0.0
        %387 = vmatprep.subr.mxu0 0.0
        %388 = vmatpush1.msra.mxu0 0.0
        %389 = vmatprep.subr.mxu0 0.0
        %390 = vmatpush1.msra.mxu0 0.0
        %391 = vmatprep.subr.mxu0 0.0
        %392 = vmatpush1.msra.mxu0 0.0
        %393 = vmatprep.subr.mxu0 0.0
        %394 = vmatpush1.msra.mxu0 0.0
        %395 = vmatprep.subr.mxu0 0.0
        %396 = vmatpush1.msra.mxu0 0.0
        %397 = vmatprep.subr.mxu0 0.0
        %398 = vmatpush1.msra.mxu0 0.0
        %399 = vmatprep.mubr.f32.mxu0 %v331
        %400 = vmatmul.mubr.f32.gmra.mrb[0].mxu0 %v321
        %v401 = vpop.f32.mrb[0].mxu0
        %v402 = vadd.f32 0.0, %v401
        %v403 = vpop.f32.mrb[0].mxu0
        %404 = vmatprep.mubr.f32.mxu0 %v333
        %405 = vmatmul.mubr.f32.gmra.mrb[0].mxu0 %v326
        %v406 = vpop.f32.mrb[0].mxu0
        %v407 = vadd.f32 0.0, %v406
        %v408 = vpop.f32.mrb[0].mxu0
        %409 = vdwg.mxu0
        %v411 = vsel %vm260, %v268, 0
        %v413 = vsel %vm260, %v270, 0
        %415 = vmatprep.subr.mxu0 0.0
        %416 = vmatpush1.msra.mxu0 %v271
        %417 = vmatprep.subr.mxu0 0.0
        %418 = vmatpush1.msra.mxu0 %v272
        %419 = vmatprep.subr.mxu0 0.0
        %420 = vmatpush1.msra.mxu0 %v273
        %421 = vmatprep.subr.mxu0 0.0
        %422 = vmatpush1.msra.mxu0 %v274
        %423 = vmatprep.subr.mxu0 0.0
        %424 = vmatpush1.msra.mxu0 %v275
        %425 = vmatprep.subr.mxu0 0.0
        %426 = vmatpush1.msra.mxu0 %v276
        %427 = vmatprep.subr.mxu0 0.0
        %428 = vmatpush1.msra.mxu0 %v277
        %429 = vmatprep.subr.mxu0 0.0
        %430 = vmatpush1.msra.mxu0 %v278
        %431 = vmatprep.subr.mxu0 0.0
        %432 = vmatpush1.msra.mxu0 %v279
        %433 = vmatprep.subr.mxu0 0.0
        %434 = vmatpush1.msra.mxu0 %v280
        %435 = vmatprep.subr.mxu0 0.0
        %436 = vmatpush1.msra.mxu0 %v281
        %437 = vmatprep.subr.mxu0 0.0
        %438 = vmatpush1.msra.mxu0 %v282
        %439 = vmatprep.subr.mxu0 0.0
        %440 = vmatpush1.msra.mxu0 %v283
        %441 = vmatprep.subr.mxu0 0.0
        %442 = vmatpush1.msra.mxu0 %v284
        %443 = vmatprep.subr.mxu0 0.0
        %444 = vmatpush1.msra.mxu0 %v285
        %445 = vmatprep.subr.mxu0 0.0
        %446 = vmatpush1.msra.mxu0 %v286
        %447 = vmatprep.subr.mxu0 0.0
        %448 = vmatpush1.msra.mxu0 %v287
        %449 = vmatprep.subr.mxu0 0.0
        %450 = vmatpush1.msra.mxu0 %v288
        %451 = vmatprep.subr.mxu0 0.0
        %452 = vmatpush1.msra.mxu0 0.0
        %453 = vmatprep.subr.mxu0 0.0
        %454 = vmatpush1.msra.mxu0 0.0
        %455 = vmatprep.subr.mxu0 0.0
        %456 = vmatpush1.msra.mxu0 0.0
        %457 = vmatprep.subr.mxu0 0.0
        %458 = vmatpush1.msra.mxu0 0.0
        %459 = vmatprep.subr.mxu0 0.0
        %460 = vmatpush1.msra.mxu0 0.0
        %461 = vmatprep.subr.mxu0 0.0
        %462 = vmatpush1.msra.mxu0 0.0
        %463 = vmatprep.subr.mxu0 0.0
        %464 = vmatpush1.msra.mxu0 0.0
        %465 = vmatprep.subr.mxu0 0.0
        %466 = vmatpush1.msra.mxu0 0.0
        %467 = vmatprep.subr.mxu0 0.0
        %468 = vmatpush1.msra.mxu0 0.0
        %469 = vmatprep.subr.mxu0 0.0
        %470 = vmatpush1.msra.mxu0 0.0
        %471 = vmatprep.subr.mxu0 0.0
        %472 = vmatpush1.msra.mxu0 0.0
        %473 = vmatprep.subr.mxu0 0.0
        %474 = vmatpush1.msra.mxu0 0.0
        %475 = vmatprep.subr.mxu0 0.0
        %476 = vmatpush1.msra.mxu0 0.0
        %477 = vmatprep.subr.mxu0 0.0
        %478 = vmatpush1.msra.mxu0 0.0
        %479 = vmatprep.mubr.f32.mxu0 %v411
        %480 = vmatmul.mubr.f32.gmra.mrb[0].mxu0 %v267
        %v481 = vpop.f32.mrb[0].mxu0
        %v482 = vadd.f32 %v402, %v481
        %v483 = vpop.f32.mrb[0].mxu0
        %484 = vmatprep.mubr.f32.mxu0 %v413
        %485 = vmatmul.mubr.f32.gmra.mrb[0].mxu0 %v269
        %v486 = vpop.f32.mrb[0].mxu0
        %v487 = vadd.f32 %v407, %v486
        %v488 = vpop.f32.mrb[0].mxu0
        %489 = vdwg.mxu0
        %v490 = vld [vmem:[#allocation2] sm:$0xfc]
        %v491 = vld [vmem:[#allocation2 + $0x8] sm:$0xfc]
        %v492 = vld [vmem:[#allocation2 + $0x20] sm:$0x3]
        %v493 = vld [vmem:[#allocation2 + $0x28] sm:$0x3]
        %s494 = scalar_lea.vmem %s1, 288
        %v495 = vld [vmem:[%s494] sm:$0xff]
        %v496 = vld [vmem:[%s494 + $0x8] sm:$0xff]
        %v497 = vld [vmem:[%s494 + $0x10] sm:$0xff]
        %v498 = vld [vmem:[%s494 + $0x18] sm:$0xff]
        %v499 = vld [vmem:[%s494 + $0x20] sm:$0xff]
        %v500 = vld [vmem:[%s494 + $0x28] sm:$0xff]
        %v501 = vld [vmem:[%s494 + $0x30] sm:$0xff]
        %v502 = vld [vmem:[%s494 + $0x38] sm:$0xff]
        %v503 = vld [vmem:[%s494 + $0x40] sm:$0xff]
        %v504 = vld [vmem:[%s494 + $0x48] sm:$0xff]
        %v505 = vld [vmem:[%s494 + $0x50] sm:$0xff]
        %v506 = vld [vmem:[%s494 + $0x58] sm:$0xff]
        %v507 = vld [vmem:[%s494 + $0x60] sm:$0xff]
        %v508 = vld [vmem:[%s494 + $0x68] sm:$0xff]
        %v509 = vld [vmem:[%s494 + $0x70] sm:$0xff]
        %v510 = vld [vmem:[%s494 + $0x78] sm:$0xff]
        %v511 = vld [vmem:[%s494 + $0x80] sm:$0xff]
        %v512 = vld [vmem:[%s494 + $0x88] sm:$0xff]
        %vm517 = vcmask 1045504
        %v518 = vrot.slane %v490, 2
        %v519 = vrot.slane %v269, 2
        %v520 = vsel %vm517, %v518, %v519
        %v521 = vrot.slane %v491, 2
        %v522 = vrot.slane %v270, 2
        %v523 = vsel %vm517, %v521, %v522
        %v524 = vrot.slane %v492, 2
        %v525 = vsel %vm517, %v519, %v524
        %v526 = vrot.slane %v493, 2
        %v527 = vsel %vm517, %v522, %v526
        %v530 = vsel %vm260, %v523, 0
        %v532 = vsel %vm260, %v527, 0
        %534 = vmatprep.subr.mxu0 0.0
        %535 = vmatpush1.msra.mxu0 %v495
        %536 = vmatprep.subr.mxu0 0.0
        %537 = vmatpush1.msra.mxu0 %v496
        %538 = vmatprep.subr.mxu0 0.0
        %539 = vmatpush1.msra.mxu0 %v497
        %540 = vmatprep.subr.mxu0 0.0
        %541 = vmatpush1.msra.mxu0 %v498
        %542 = vmatprep.subr.mxu0 0.0
        %543 = vmatpush1.msra.mxu0 %v499
        %544 = vmatprep.subr.mxu0 0.0
        %545 = vmatpush1.msra.mxu0 %v500
        %546 = vmatprep.subr.mxu0 0.0
        %547 = vmatpush1.msra.mxu0 %v501
        %548 = vmatprep.subr.mxu0 0.0
        %549 = vmatpush1.msra.mxu0 %v502
        %550 = vmatprep.subr.mxu0 0.0
        %551 = vmatpush1.msra.mxu0 %v503
        %552 = vmatprep.subr.mxu0 0.0
        %553 = vmatpush1.msra.mxu0 %v504
        %554 = vmatprep.subr.mxu0 0.0
        %555 = vmatpush1.msra.mxu0 %v505
        %556 = vmatprep.subr.mxu0 0.0
        %557 = vmatpush1.msra.mxu0 %v506
        %558 = vmatprep.subr.mxu0 0.0
        %559 = vmatpush1.msra.mxu0 %v507
        %560 = vmatprep.subr.mxu0 0.0
        %561 = vmatpush1.msra.mxu0 %v508
        %562 = vmatprep.subr.mxu0 0.0
        %563 = vmatpush1.msra.mxu0 %v509
        %564 = vmatprep.subr.mxu0 0.0
        %565 = vmatpush1.msra.mxu0 %v510
        %566 = vmatprep.subr.mxu0 0.0
        %567 = vmatpush1.msra.mxu0 %v511
        %568 = vmatprep.subr.mxu0 0.0
        %569 = vmatpush1.msra.mxu0 %v512
        %570 = vmatprep.subr.mxu0 0.0
        %571 = vmatpush1.msra.mxu0 0.0
        %572 = vmatprep.subr.mxu0 0.0
        %573 = vmatpush1.msra.mxu0 0.0
        %574 = vmatprep.subr.mxu0 0.0
        %575 = vmatpush1.msra.mxu0 0.0
        %576 = vmatprep.subr.mxu0 0.0
        %577 = vmatpush1.msra.mxu0 0.0
        %578 = vmatprep.subr.mxu0 0.0
        %579 = vmatpush1.msra.mxu0 0.0
        %580 = vmatprep.subr.mxu0 0.0
        %581 = vmatpush1.msra.mxu0 0.0
        %582 = vmatprep.subr.mxu0 0.0
        %583 = vmatpush1.msra.mxu0 0.0
        %584 = vmatprep.subr.mxu0 0.0
        %585 = vmatpush1.msra.mxu0 0.0
        %586 = vmatprep.subr.mxu0 0.0
        %587 = vmatpush1.msra.mxu0 0.0
        %588 = vmatprep.subr.mxu0 0.0
        %589 = vmatpush1.msra.mxu0 0.0
        %590 = vmatprep.subr.mxu0 0.0
        %591 = vmatpush1.msra.mxu0 0.0
        %592 = vmatprep.subr.mxu0 0.0
        %593 = vmatpush1.msra.mxu0 0.0
        %594 = vmatprep.subr.mxu0 0.0
        %595 = vmatpush1.msra.mxu0 0.0
        %596 = vmatprep.subr.mxu0 0.0
        %597 = vmatpush1.msra.mxu0 0.0
        %598 = vmatprep.mubr.f32.mxu0 %v530
        %599 = vmatmul.mubr.f32.gmra.mrb[0].mxu0 %v520
        %v600 = vpop.f32.mrb[0].mxu0
        %v601 = vadd.f32 0.0, %v600
        %v602 = vpop.f32.mrb[0].mxu0
        %603 = vmatprep.mubr.f32.mxu0 %v532
        %604 = vmatmul.mubr.f32.gmra.mrb[0].mxu0 %v525
        %v605 = vpop.f32.mrb[0].mxu0
        %v606 = vadd.f32 0.0, %v605
        %v607 = vpop.f32.mrb[0].mxu0
        %608 = vdwg.mxu0
        %v609 = vadd.f32 %v482, %v601
        %v610 = vadd.f32 %v487, %v606
        %v611 = vld [vmem:[%s2] sm:$0x1]
        %v613 = vlaneseq
        %v614 = vshrl.u32 %v613, 7
        %v615 = vsub.s32 0, %v614
        %v616 = vrot.slane %v611, %v615
        %v618 = vadd.f32 %v609, %v616
        %v619 = vadd.f32 %v610, %v616
        %v620 = vxor.u32 %v618, 2147483648
        %v621 = vxor.u32 %v619, 2147483648
        %v622 = vmul.f32 %v620, 1.442695
        %v623 = vpow.pop %v622
        %v624 = vmul.f32 %v621, 1.442695
        %v625 = vpow.pop %v624
        %v626 = vadd.f32 %v623, 1.0
        %v627 = vadd.f32 %v625, 1.0
        %v628 = vrcp.pop %v626
        %v629 = vmul.f32 1.0, %v628
        %v630 = vrcp.pop %v627
        %v631 = vmul.f32 1.0, %v630
        %v632 = vmul.f32 %v618, %v629
        %v633 = vmul.f32 %v619, %v631
        %636 = vrot.lane.b32.xlu0 %v632, 4
        %v637 = vpop.permute.xlu0 %636
        %638 = vrot.lane.b32.xlu0 %v633, 4
        %v639 = vpop.permute.xlu0 %638
        %vm642 = vcmask 31744
        %v643 = vsel %vm642, 0.0, %v637
        %v644 = vsel %vm642, 0.0, %v639
        %vm645 = vcmask 556032
        %v646 = vsel %vm645, %v643, 0.0
        %v647 = vsel %vm645, %v644, 0.0
        %v650 = vrot.slane %v646, 7
        %v651 = vrot.slane %v647, 7
        %v652 = vsel %vm242, %v650, %v651
        %v656 = vsel %vm242, 0.0, %v650
        %v657 = vsel %vm242, %v651, 0.0
        %vm658 = vcmask 588800
        %659 = vst.msk [vmem:[#allocation3] sm:$0xff] %vm658, %v656
        %660 = vst.msk [vmem:[#allocation3 + $0x8] sm:$0xff] %vm658, %v652
        %vm661 = vcmask 582656
        %662 = vst.msk [vmem:[#allocation3 + $0x10] sm:$0x3] %vm661, %v657
        %v663 = vld [vmem:[#allocation3] sm:$0xff]
        %v664 = vld [vmem:[#allocation3 + $0x8] sm:$0xff]
        %v665 = vld [vmem:[%s3] sm:$0xff]
        %v666 = vld [vmem:[%s3 + $0x8] sm:$0xff]
        %v667 = vld [vmem:[%s3 + $0x10] sm:$0xff]
        %v668 = vld [vmem:[%s3 + $0x18] sm:$0xff]
        %v669 = vld [vmem:[%s3 + $0x20] sm:$0xff]
        %v670 = vld [vmem:[%s3 + $0x28] sm:$0xff]
        %v671 = vld [vmem:[%s3 + $0x30] sm:$0xff]
        %v672 = vld [vmem:[%s3 + $0x38] sm:$0xff]
        %v673 = vld [vmem:[%s3 + $0x40] sm:$0xff]
        %v674 = vld [vmem:[#allocation3 + $0x1] sm:$0xff]
        %v675 = vld [vmem:[#allocation3 + $0x9] sm:$0xff]
        %s676 = scalar_lea.vmem %s3, 72
        %v677 = vld [vmem:[%s676] sm:$0xff]
        %v678 = vld [vmem:[%s676 + $0x8] sm:$0xff]
        %v679 = vld [vmem:[%s676 + $0x10] sm:$0xff]
        %v680 = vld [vmem:[%s676 + $0x18] sm:$0xff]
        %v681 = vld [vmem:[%s676 + $0x20] sm:$0xff]
        %v682 = vld [vmem:[%s676 + $0x28] sm:$0xff]
        %v683 = vld [vmem:[%s676 + $0x30] sm:$0xff]
        %v684 = vld [vmem:[%s676 + $0x38] sm:$0xff]
        %v685 = vld [vmem:[%s676 + $0x40] sm:$0xff]
        %v687 = vsel %vm658, %v674, 0
        %v690 = vsel %vm658, %v675, 0
        %692 = vmatprep.subr.mxu0 0.0
        %693 = vmatpush1.msra.mxu0 %v677
        %694 = vmatprep.subr.mxu0 0.0
        %695 = vmatpush1.msra.mxu0 %v678
        %696 = vmatprep.subr.mxu0 0.0
        %697 = vmatpush1.msra.mxu0 %v679
        %698 = vmatprep.subr.mxu0 0.0
        %699 = vmatpush1.msra.mxu0 %v680
        %700 = vmatprep.subr.mxu0 0.0
        %701 = vmatpush1.msra.mxu0 %v681
        %702 = vmatprep.subr.mxu0 0.0
        %703 = vmatpush1.msra.mxu0 %v682
        %704 = vmatprep.subr.mxu0 0.0
        %705 = vmatpush1.msra.mxu0 %v683
        %706 = vmatprep.subr.mxu0 0.0
        %707 = vmatpush1.msra.mxu0 %v684
        %708 = vmatprep.subr.mxu0 0.0
        %709 = vmatpush1.msra.mxu0 %v685
        %710 = vmatprep.subr.mxu0 0.0
        %711 = vmatpush1.msra.mxu0 0.0
        %712 = vmatprep.subr.mxu0 0.0
        %713 = vmatpush1.msra.mxu0 0.0
        %714 = vmatprep.subr.mxu0 0.0
        %715 = vmatpush1.msra.mxu0 0.0
        %716 = vmatprep.subr.mxu0 0.0
        %717 = vmatpush1.msra.mxu0 0.0
        %718 = vmatprep.subr.mxu0 0.0
        %719 = vmatpush1.msra.mxu0 0.0
        %720 = vmatprep.subr.mxu0 0.0
        %721 = vmatpush1.msra.mxu0 0.0
        %722 = vmatprep.subr.mxu0 0.0
        %723 = vmatpush1.msra.mxu0 0.0
        %724 = vmatprep.subr.mxu0 0.0
        %725 = vmatpush1.msra.mxu0 0.0
        %726 = vmatprep.subr.mxu0 0.0
        %727 = vmatpush1.msra.mxu0 0.0
        %728 = vmatprep.subr.mxu0 0.0
        %729 = vmatpush1.msra.mxu0 0.0
        %730 = vmatprep.subr.mxu0 0.0
        %731 = vmatpush1.msra.mxu0 0.0
        %732 = vmatprep.subr.mxu0 0.0
        %733 = vmatpush1.msra.mxu0 0.0
        %734 = vmatprep.subr.mxu0 0.0
        %735 = vmatpush1.msra.mxu0 0.0
        %736 = vmatprep.subr.mxu0 0.0
        %737 = vmatpush1.msra.mxu0 0.0
        %738 = vmatprep.subr.mxu0 0.0
        %739 = vmatpush1.msra.mxu0 0.0
        %740 = vmatprep.subr.mxu0 0.0
        %741 = vmatpush1.msra.mxu0 0.0
        %742 = vmatprep.subr.mxu0 0.0
        %743 = vmatpush1.msra.mxu0 0.0
        %744 = vmatprep.subr.mxu0 0.0
        %745 = vmatpush1.msra.mxu0 0.0
        %746 = vmatprep.subr.mxu0 0.0
        %747 = vmatpush1.msra.mxu0 0.0
        %748 = vmatprep.subr.mxu0 0.0
        %749 = vmatpush1.msra.mxu0 0.0
        %750 = vmatprep.subr.mxu0 0.0
        %751 = vmatpush1.msra.mxu0 0.0
        %752 = vmatprep.subr.mxu0 0.0
        %753 = vmatpush1.msra.mxu0 0.0
        %754 = vmatprep.subr.mxu0 0.0
        %755 = vmatpush1.msra.mxu0 0.0
        %756 = vmatprep.mubr.f32.mxu0 0.0
        %757 = vmatmul.mubr.f32.gmra.mrb[0].mxu0 %v687
        %v758 = vpop.f32.mrb[0].mxu0
        %v759 = vadd.f32 0.0, %v758
        %v760 = vpop.f32.mrb[0].mxu0
        %761 = vmatprep.mubr.f32.mxu0 0.0
        %762 = vmatmul.mubr.f32.gmra.mrb[0].mxu0 %v690
        %v763 = vpop.f32.mrb[0].mxu0
        %v764 = vadd.f32 0.0, %v763
        %v765 = vpop.f32.mrb[0].mxu0
        %766 = vdwg.mxu0
        %v768 = vsel %vm658, %v663, 0
        %v771 = vsel %vm658, %v664, 0
        %773 = vmatprep.subr.mxu0 0.0
        %774 = vmatpush1.msra.mxu0 %v665
        %775 = vmatprep.subr.mxu0 0.0
        %776 = vmatpush1.msra.mxu0 %v666
        %777 = vmatprep.subr.mxu0 0.0
        %778 = vmatpush1.msra.mxu0 %v667
        %779 = vmatprep.subr.mxu0 0.0
        %780 = vmatpush1.msra.mxu0 %v668
        %781 = vmatprep.subr.mxu0 0.0
        %782 = vmatpush1.msra.mxu0 %v669
        %783 = vmatprep.subr.mxu0 0.0
        %784 = vmatpush1.msra.mxu0 %v670
        %785 = vmatprep.subr.mxu0 0.0
        %786 = vmatpush1.msra.mxu0 %v671
        %787 = vmatprep.subr.mxu0 0.0
        %788 = vmatpush1.msra.mxu0 %v672
        %789 = vmatprep.subr.mxu0 0.0
        %790 = vmatpush1.msra.mxu0 %v673
        %791 = vmatprep.subr.mxu0 0.0
        %792 = vmatpush1.msra.mxu0 0.0
        %793 = vmatprep.subr.mxu0 0.0
        %794 = vmatpush1.msra.mxu0 0.0
        %795 = vmatprep.subr.mxu0 0.0
        %796 = vmatpush1.msra.mxu0 0.0
        %797 = vmatprep.subr.mxu0 0.0
        %798 = vmatpush1.msra.mxu0 0.0
        %799 = vmatprep.subr.mxu0 0.0
        %800 = vmatpush1.msra.mxu0 0.0
        %801 = vmatprep.subr.mxu0 0.0
        %802 = vmatpush1.msra.mxu0 0.0
        %803 = vmatprep.subr.mxu0 0.0
        %804 = vmatpush1.msra.mxu0 0.0
        %805 = vmatprep.subr.mxu0 0.0
        %806 = vmatpush1.msra.mxu0 0.0
        %807 = vmatprep.subr.mxu0 0.0
        %808 = vmatpush1.msra.mxu0 0.0
        %809 = vmatprep.subr.mxu0 0.0
        %810 = vmatpush1.msra.mxu0 0.0
        %811 = vmatprep.subr.mxu0 0.0
        %812 = vmatpush1.msra.mxu0 0.0
        %813 = vmatprep.subr.mxu0 0.0
        %814 = vmatpush1.msra.mxu0 0.0
        %815 = vmatprep.subr.mxu0 0.0
        %816 = vmatpush1.msra.mxu0 0.0
        %817 = vmatprep.subr.mxu0 0.0
        %818 = vmatpush1.msra.mxu0 0.0
        %819 = vmatprep.subr.mxu0 0.0
        %820 = vmatpush1.msra.mxu0 0.0
        %821 = vmatprep.subr.mxu0 0.0
        %822 = vmatpush1.msra.mxu0 0.0
        %823 = vmatprep.subr.mxu0 0.0
        %824 = vmatpush1.msra.mxu0 0.0
        %825 = vmatprep.subr.mxu0 0.0
        %826 = vmatpush1.msra.mxu0 0.0
        %827 = vmatprep.subr.mxu0 0.0
        %828 = vmatpush1.msra.mxu0 0.0
        %829 = vmatprep.subr.mxu0 0.0
        %830 = vmatpush1.msra.mxu0 0.0
        %831 = vmatprep.subr.mxu0 0.0
        %832 = vmatpush1.msra.mxu0 0.0
        %833 = vmatprep.subr.mxu0 0.0
        %834 = vmatpush1.msra.mxu0 0.0
        %835 = vmatprep.subr.mxu0 0.0
        %836 = vmatpush1.msra.mxu0 0.0
        %837 = vmatprep.mubr.f32.mxu0 0.0
        %838 = vmatmul.mubr.f32.gmra.mrb[0].mxu0 %v768
        %v839 = vpop.f32.mrb[0].mxu0
        %v840 = vadd.f32 %v759, %v839
        %v841 = vpop.f32.mrb[0].mxu0
        %842 = vmatprep.mubr.f32.mxu0 0.0
        %843 = vmatmul.mubr.f32.gmra.mrb[0].mxu0 %v771
        %v844 = vpop.f32.mrb[0].mxu0
        %v845 = vadd.f32 %v764, %v844
        %v846 = vpop.f32.mrb[0].mxu0
        %847 = vdwg.mxu0
        %v848 = vld [vmem:[#allocation3 + $0x2] sm:$0xff]
        %v849 = vld [vmem:[#allocation3 + $0xa] sm:$0xff]
        %s850 = scalar_lea.vmem %s3, 144
        %v851 = vld [vmem:[%s850] sm:$0xff]
        %v852 = vld [vmem:[%s850 + $0x8] sm:$0xff]
        %v853 = vld [vmem:[%s850 + $0x10] sm:$0xff]
        %v854 = vld [vmem:[%s850 + $0x18] sm:$0xff]
        %v855 = vld [vmem:[%s850 + $0x20] sm:$0xff]
        %v856 = vld [vmem:[%s850 + $0x28] sm:$0xff]
        %v857 = vld [vmem:[%s850 + $0x30] sm:$0xff]
        %v858 = vld [vmem:[%s850 + $0x38] sm:$0xff]
        %v859 = vld [vmem:[%s850 + $0x40] sm:$0xff]
        %v861 = vsel %vm658, %v848, 0
        %v864 = vsel %vm658, %v849, 0
        %866 = vmatprep.subr.mxu0 0.0
        %867 = vmatpush1.msra.mxu0 %v851
        %868 = vmatprep.subr.mxu0 0.0
        %869 = vmatpush1.msra.mxu0 %v852
        %870 = vmatprep.subr.mxu0 0.0
        %871 = vmatpush1.msra.mxu0 %v853
        %872 = vmatprep.subr.mxu0 0.0
        %873 = vmatpush1.msra.mxu0 %v854
        %874 = vmatprep.subr.mxu0 0.0
        %875 = vmatpush1.msra.mxu0 %v855
        %876 = vmatprep.subr.mxu0 0.0
        %877 = vmatpush1.msra.mxu0 %v856
        %878 = vmatprep.subr.mxu0 0.0
        %879 = vmatpush1.msra.mxu0 %v857
        %880 = vmatprep.subr.mxu0 0.0
        %881 = vmatpush1.msra.mxu0 %v858
        %882 = vmatprep.subr.mxu0 0.0
        %883 = vmatpush1.msra.mxu0 %v859
        %884 = vmatprep.subr.mxu0 0.0
        %885 = vmatpush1.msra.mxu0 0.0
        %886 = vmatprep.subr.mxu0 0.0
        %887 = vmatpush1.msra.mxu0 0.0
        %888 = vmatprep.subr.mxu0 0.0
        %889 = vmatpush1.msra.mxu0 0.0
        %890 = vmatprep.subr.mxu0 0.0
        %891 = vmatpush1.msra.mxu0 0.0
        %892 = vmatprep.subr.mxu0 0.0
        %893 = vmatpush1.msra.mxu0 0.0
        %894 = vmatprep.subr.mxu0 0.0
        %895 = vmatpush1.msra.mxu0 0.0
        %896 = vmatprep.subr.mxu0 0.0
        %897 = vmatpush1.msra.mxu0 0.0
        %898 = vmatprep.subr.mxu0 0.0
        %899 = vmatpush1.msra.mxu0 0.0
        %900 = vmatprep.subr.mxu0 0.0
        %901 = vmatpush1.msra.mxu0 0.0
        %902 = vmatprep.subr.mxu0 0.0
        %903 = vmatpush1.msra.mxu0 0.0
        %904 = vmatprep.subr.mxu0 0.0
        %905 = vmatpush1.msra.mxu0 0.0
        %906 = vmatprep.subr.mxu0 0.0
        %907 = vmatpush1.msra.mxu0 0.0
        %908 = vmatprep.subr.mxu0 0.0
        %909 = vmatpush1.msra.mxu0 0.0
        %910 = vmatprep.subr.mxu0 0.0
        %911 = vmatpush1.msra.mxu0 0.0
        %912 = vmatprep.subr.mxu0 0.0
        %913 = vmatpush1.msra.mxu0 0.0
        %914 = vmatprep.subr.mxu0 0.0
        %915 = vmatpush1.msra.mxu0 0.0
        %916 = vmatprep.subr.mxu0 0.0
        %917 = vmatpush1.msra.mxu0 0.0
        %918 = vmatprep.subr.mxu0 0.0
        %919 = vmatpush1.msra.mxu0 0.0
        %920 = vmatprep.subr.mxu0 0.0
        %921 = vmatpush1.msra.mxu0 0.0
        %922 = vmatprep.subr.mxu0 0.0
        %923 = vmatpush1.msra.mxu0 0.0
        %924 = vmatprep.subr.mxu0 0.0
        %925 = vmatpush1.msra.mxu0 0.0
        %926 = vmatprep.subr.mxu0 0.0
        %927 = vmatpush1.msra.mxu0 0.0
        %928 = vmatprep.subr.mxu0 0.0
        %929 = vmatpush1.msra.mxu0 0.0
        %930 = vmatprep.mubr.f32.mxu0 0.0
        %931 = vmatmul.mubr.f32.gmra.mrb[0].mxu0 %v861
        %v932 = vpop.f32.mrb[0].mxu0
        %v933 = vadd.f32 0.0, %v932
        %v934 = vpop.f32.mrb[0].mxu0
        %935 = vmatprep.mubr.f32.mxu0 0.0
        %936 = vmatmul.mubr.f32.gmra.mrb[0].mxu0 %v864
        %v937 = vpop.f32.mrb[0].mxu0
        %v938 = vadd.f32 0.0, %v937
        %v939 = vpop.f32.mrb[0].mxu0
        %940 = vdwg.mxu0
        %v941 = vadd.f32 %v840, %v933
        %v942 = vadd.f32 %v845, %v938
        %v943 = vld [vmem:[%s4] sm:$0x1]
        %v945 = vlaneseq
        %v946 = vshrl.u32 %v945, 7
        %v947 = vsub.s32 0, %v946
        %v948 = vrot.slane %v943, %v947
        %v950 = vadd.f32 %v941, %v948
        %v951 = vadd.f32 %v942, %v948
        %v952 = vxor.u32 %v950, 2147483648
        %v953 = vxor.u32 %v951, 2147483648
        %v954 = vmul.f32 %v952, 1.442695
        %v955 = vpow.pop %v954
        %v956 = vmul.f32 %v953, 1.442695
        %v957 = vpow.pop %v956
        %v958 = vadd.f32 %v955, 1.0
        %v959 = vadd.f32 %v957, 1.0
        %v960 = vrcp.pop %v958
        %v961 = vmul.f32 1.0, %v960
        %v962 = vrcp.pop %v959
        %v963 = vmul.f32 1.0, %v962
        %v964 = vmul.f32 %v950, %v961
        %v965 = vmul.f32 %v951, %v963
        %v966 = vadd.f32 %v223, %v964
        %v967 = vadd.f32 %v224, %v965
        %968 = vst [vmem:[%s217] sm:$0xff] %v966
        %969 = vst [vmem:[%s217 + $0x8] sm:$0xff] %v967
        %s970 = sand.u32 %s137, 1
        %s971 = scalar_lea.sflag [#allocation5], %s970
        %s972 = sand.u32 %s137, 1
        %s973 = smul.addr %s972, 16
        %s974 = scalar_lea.vmem [#allocation4], %s973
        // Predicated region
        $region41: #{tpu_custom_call.1} parent=39 // pred_check
          %p975 = pneg %p147
        $region42: #{tpu_custom_call.1} parent=39 // pred_check_branch
          %977 = sbr.rel (%p975) target = $region44
        $region43: #{tpu_custom_call.1} parent=39 // pred_region
          %s979 = ssub.s32 256, 256
          %980 = vsyncadd %s971, %s979
          %s981 = smul.addr %s19, 2
          %s982 = smul.addr %s981, 128
          %s983 = scalar_lea.hbm %s5, %s982
          %s984 = sshll.u32 %s974, 4
          %s985 = int_to_ptr.vmem [resolvable:$true] %s984
          %990 = dma.vmem_to_hbm [thread:$0]  %s985, 256, %s983, %s971, 128, 128, 8
        $region44: #{tpu_custom_call.1} parent=39 // pred_fallthru
          _
      $region40: #{tpu_custom_call.1} parent=5 // pred_fallthru
        _
      %p991 = scmp.le.s32.totalorder 2, %s14
      // Predicated region
      $region45: #{tpu_custom_call.1} parent=5 // pred_check
        %p992 = pneg %p991
      $region46: #{tpu_custom_call.1} parent=5 // pred_check_branch
        %994 = sbr.rel (%p992) target = $region48
      $region47: #{tpu_custom_call.1} parent=5 // pred_region
        %s995 = ssub.s32 %s14, 2
        // Predicated region
        $region49: #{tpu_custom_call.1} parent=47 // pred_check
          %p996 = pneg %p153
        $region50: #{tpu_custom_call.1} parent=47 // pred_check_branch
          %998 = sbr.rel (%p996) target = $region52
        $region51: #{tpu_custom_call.1} parent=47 // pred_region
          %s999 = sand.u32 %s138, 1
          %s1000 = scalar_lea.sflag [#allocation5], %s999
          %s1001 = sand.u32 %s138, 1
          %s1002 = smul.addr %s1001, 16
          %s1003 = scalar_lea.vmem [#allocation4], %s1002
          %1004 = dma.done %s1000, 256
        $region52: #{tpu_custom_call.1} parent=47 // pred_fallthru
          _
      $region48: #{tpu_custom_call.1} parent=5 // pred_fallthru
        _
    $region6: #{tpu_custom_call.1} parent=1 // loop_footer
      %s18 = sadd.s32 1, %s14
    $region7: #{tpu_custom_call.1} parent=1 // loop_footer_branch
      %13 = sbr.rel target = $region3
    $region8: #{tpu_custom_call.1} parent=1 // loop_exit
      _
    %1005 = vsyncpa [#allocation5], 1
    %s1006 = scalar_lea.sflag [#allocation5], 1
    %1007 = vsyncpa %s1006, 1

</llo_original>
